<compile_context>
chip_gen: v7x
topology: tpu7x:2x2x1
jax: 0.10.0
libtpu: 0.0.40
codegen_flags: <defaults>
</compile_context>

<pallas_src>
import functools

import jax
import jax.numpy as jnp
from jax.experimental import pallas as pl
from jax.experimental.pallas import tpu as pltpu

_LANE = 128
_SUBLANE = 8
_MAX_BLOCK_ROWS = 8192          # rows per grid step; sweepable 4096..16384
_LOG2 = 0.6931471805599453


def _round_up(x: int, m: int) -> int:
    return ((x + m - 1) // m) * m


def _logcosh_kernel(p_ref, t_ref, o_ref, acc_ref, *,
                    block_rows, valid_rows, blocks_per_partial,
                    first_masked_block, mask_needed):
    """Accumulate sum(log(cosh(p - t)) + log2) for this partial's rows."""
    i = pl.program_id(1)                 # reduction step within the partial

    @pl.when(i == 0)
    def _init():
        acc_ref[...] = jnp.zeros_like(acc_ref)

    p = p_ref[...]
    t = t_ref[...]
    if p.dtype != jnp.float32:
        p = p.astype(jnp.float32)
    if t.dtype != jnp.float32:
        t = t.astype(jnp.float32)

    a = jnp.abs(p - t)
    # Stable log(cosh(d)) + log(2) = |d| + log1p(exp(-2|d|)).
    # The per-element -log(2) is hoisted to a single wrapper-side correction.
    val = a + jnp.log1p(jnp.exp(-2.0 * a))

    def fold(v):
        # Fold (block_rows, 128) into the (8, 128) accumulator with VPU adds.
        return v.reshape(block_rows // _SUBLANE, _SUBLANE, _LANE).sum(axis=0)

    if mask_needed:
        # Only the ragged last block and the at-most-one duplicated (clamped)
        # block of the second partial ever need the row mask; everything else
        # takes the mask-free fast path.
        global_block = pl.program_id(0) * blocks_per_partial + i
        is_masked_step = global_block >= first_masked_block

        @pl.when(jnp.logical_not(is_masked_step))
        def _fast():
            acc_ref[...] += fold(val)

        @pl.when(is_masked_step)
        def _masked():
            row_ids = (global_block * block_rows
                       + jax.lax.broadcasted_iota(jnp.int32, val.shape, 0))
            acc_ref[...] += fold(
                jnp.where(row_ids < valid_rows, val, jnp.float32(0.0)))
    else:
        acc_ref[...] += fold(val)

    @pl.when(i == pl.num_programs(1) - 1)
    def _finalize():
        o_ref[...] = acc_ref[...]


def log_cosh_loss(x_predicted: jax.Array, x: jax.Array) -> jax.Array:
    """mean(log(cosh(x_predicted - x))) computed in a Pallas TPU kernel."""
    assert x_predicted.shape == x.shape, "shapes must match"
    n_elements = x_predicted.size

    p_flat = jnp.ravel(x_predicted)
    t_flat = jnp.ravel(x)

    rem = n_elements % _LANE
    main_n = n_elements - rem

    tail_sum = jnp.float32(0.0)
    if rem:
        # Rare ragged path: sum the (<128-element) tail in plain JAX instead of
        # padding (padding would rewrite both full tensors in HBM).
        d_tail = (p_flat[main_n:].astype(jnp.float32)
                  - t_flat[main_n:].astype(jnp.float32))
        a_tail = jnp.abs(d_tail)
        tail_sum = jnp.sum(
            a_tail + jnp.log1p(jnp.exp(-2.0 * a_tail)) - jnp.float32(_LOG2))
        p_flat = jax.lax.slice(p_flat, (0,), (main_n,))
        t_flat = jax.lax.slice(t_flat, (0,), (main_n,))

    if main_n == 0:
        # Degenerate inputs (0 or <128 elements): pure-JAX result.
        return tail_sum / jnp.float32(n_elements)

    rows = main_n // _LANE
    p2d = p_flat.reshape(rows, _LANE)
    t2d = t_flat.reshape(rows, _LANE)

    # Sub-32-bit dtypes pack along sublanes -> round block rows accordingly
    # (16 for bf16/fp16, 32 for 8-bit).  _MAX_BLOCK_ROWS is a multiple of 32.
    min_itemsize = min(jnp.dtype(x_predicted.dtype).itemsize,
                       jnp.dtype(x.dtype).itemsize)
    row_mult = _SUBLANE * max(1, 4 // max(1, min_itemsize))
    block_rows = min(_MAX_BLOCK_ROWS, _round_up(rows, row_mult))
    total_blocks = pl.cdiv(rows, block_rows)
    ragged = (rows % block_rows) != 0

    # Two partial sums -> one per TensorCore on v7x.  Only split when it does
    # not create a (mostly wasted) duplicated block on single-TC chips.
    if total_blocks >= 2 and (total_blocks % 2 == 0 or total_blocks >= 8):
        num_partials = 2
    else:
        num_partials = 1
    blocks_per_partial = pl.cdiv(total_blocks, num_partials)

    first_masked_block = total_blocks - 1 if ragged else total_blocks
    mask_needed = (num_partials * blocks_per_partial - 1) >= first_masked_block

    kernel = functools.partial(
        _logcosh_kernel,
        block_rows=block_rows,
        valid_rows=rows,
        blocks_per_partial=blocks_per_partial,
        first_masked_block=first_masked_block,
        mask_needed=mask_needed)

    def in_map(c, i):
        # Clamp so the (at most one) duplicated tail step of the second
        # partial DMAs a valid block; the kernel masks its contribution to 0.
        blk = jnp.minimum(c * blocks_per_partial + i, total_blocks - 1)
        return (blk, 0)

    partials = pl.pallas_call(
        kernel,
        out_shape=jax.ShapeDtypeStruct((num_partials * _SUBLANE, _LANE),
                                       jnp.float32),
        grid_spec=pltpu.PrefetchScalarGridSpec(
            num_scalar_prefetch=0,
            grid=(num_partials, blocks_per_partial),
            in_specs=[
                pl.BlockSpec((block_rows, _LANE), in_map),
                pl.BlockSpec((block_rows, _LANE), in_map),
            ],
            out_specs=pl.BlockSpec((_SUBLANE, _LANE), lambda c, i: (c, 0)),
            scratch_shapes=[pltpu.VMEM((_SUBLANE, _LANE), jnp.float32)],
        ),
        compiler_params=pltpu.CompilerParams(
            # TODO(synk): verify on v7x (xprof per-core occupancy) that the
            # size-2 "parallel" axis really engages both TensorCores; if not,
            # switch to pltpu.CORE_PARALLEL / an explicit core_map split.
            dimension_semantics=("parallel", "arbitrary"),
            # Actual use at block_rows=8192 f32 is ~17 MiB (2 inputs x 2
            # buffers x 4 MiB + scratch); 48 MiB gives headroom and stays
            # under v7x's 64 MiB physical VMEM.
            vmem_limit_bytes=48 * 1024 * 1024,
        ),
    )(p2d, t2d)

    # Kernel accumulated log(cosh(d)) + log(2) per element over exactly
    # main_n unmasked lanes -> one scalar correction, then add the tail and
    # normalize to the mean.
    total = (jnp.sum(partials)
             - jnp.float32(main_n) * jnp.float32(_LOG2)
             + tail_sum)
    return total / jnp.float32(n_elements)


if __name__ == "__main__":
    key = jax.random.PRNGKey(0)
    k1, k2 = jax.random.split(key)

    # Small NCHW-style inputs, consistent with typical use of this loss.
    shape = (2, 4, 16, 16)
    x_predicted = jax.random.normal(k1, shape, dtype=jnp.float32)
    x = jax.random.normal(k2, shape, dtype=jnp.float32)

    loss = log_cosh_loss(x_predicted, x)
    jax.block_until_ready(loss)

    # Pure-JAX reference (same math as the PyTorch module; diffs are small so
    # the naive log(cosh(.)) form does not overflow here).
    ref = jnp.mean(jnp.log(jnp.cosh(x_predicted - x)))
    assert jnp.allclose(loss, ref, rtol=1e-5, atol=1e-6), (loss, ref)

    print("KERNEL_OK")
</pallas_src>

<mosaic_0001>
module attributes {stable_mosaic.version = 11 : i64} {
  func.func @_logcosh_kernel(%arg0: i32, %arg1: i32, %arg2: memref<16x128xf32, #tpu.memory_space<vmem>>, %arg3: memref<16x128xf32, #tpu.memory_space<vmem>>, %arg4: memref<8x128xf32, #tpu.memory_space<vmem>>, %arg5: memref<8x128xf32, #tpu.memory_space<vmem>>) attributes {dimension_semantics = [#tpu.dimension_semantics<parallel>, #tpu.dimension_semantics<arbitrary>], iteration_bounds = array<i64: 1, 1>, scalar_prefetch = 0 : i64, scratch_operands = 1 : i64, tpu.core_type = #tpu.core_type<tc>, window_params = [{transform_indices = @transform_0, window_bounds = array<i64: 16, 128>}, {transform_indices = @transform_1, window_bounds = array<i64: 16, 128>}, {transform_indices = @transform_2, window_bounds = array<i64: 8, 128>}]} {
    %c0_i32 = arith.constant 0 : i32
    %0 = arith.cmpi eq, %arg1, %c0_i32 : i32
    %1 = arith.extui %0 : i1 to i32
    %c0_i32_0 = arith.constant 0 : i32
    %2 = arith.cmpi ne, %1, %c0_i32_0 : i32
    scf.if %2 {
      %cst_11 = arith.constant 0.000000e+00 : f32
      %20 = vector.broadcast %cst_11 : f32 to vector<8x128xf32>
      %c0_12 = arith.constant 0 : index
      %c0_13 = arith.constant 0 : index
      %21 = vector.load %arg5[%c0_12, %c0_13] : memref<8x128xf32, #tpu.memory_space<vmem>>, vector<8x128xf32>
      tpu.vector_store %arg5[%c0_12, %c0_13], %20 {strides = array<i32>} : memref<8x128xf32, #tpu.memory_space<vmem>>, vector<8x128xf32>,
    } else {
    }
    %c0 = arith.constant 0 : index
    %c0_1 = arith.constant 0 : index
    %3 = vector.load %arg2[%c0, %c0_1] : memref<16x128xf32, #tpu.memory_space<vmem>>, vector<16x128xf32>
    %c0_2 = arith.constant 0 : index
    %c0_3 = arith.constant 0 : index
    %4 = vector.load %arg3[%c0_2, %c0_3] : memref<16x128xf32, #tpu.memory_space<vmem>>, vector<16x128xf32>
    %5 = arith.subf %3, %4 : vector<16x128xf32>
    %6 = math.absf %5 : vector<16x128xf32>
    %cst = arith.constant -2.000000e+00 : f32
    %7 = vector.broadcast %cst : f32 to vector<16x128xf32>
    %8 = arith.mulf %7, %6 : vector<16x128xf32>
    %9 = math.exp %8 : vector<16x128xf32>
    %10 = math.log1p %9 : vector<16x128xf32>
    %11 = arith.addf %6, %10 : vector<16x128xf32>
    %c0_4 = arith.constant 0 : index
    %c0_5 = arith.constant 0 : index
    %12 = vector.load %arg5[%c0_4, %c0_5] : memref<8x128xf32, #tpu.memory_space<vmem>>, vector<8x128xf32>
    %13 = vector.shape_cast %11 : vector<16x128xf32> to vector<2x8x128xf32>
    %cst_6 = arith.constant dense<0.000000e+00> : vector<8x128xf32>
    %14 = vector.multi_reduction <add>, %13, %cst_6 [0] : vector<2x8x128xf32> to vector<8x128xf32>
    %15 = arith.addf %12, %14 : vector<8x128xf32>
    %c0_7 = arith.constant 0 : index
    %c0_8 = arith.constant 0 : index
    %16 = vector.load %arg5[%c0_7, %c0_8] : memref<8x128xf32, #tpu.memory_space<vmem>>, vector<8x128xf32>
    tpu.vector_store %arg5[%c0_7, %c0_8], %15 {strides = array<i32>} : memref<8x128xf32, #tpu.memory_space<vmem>>, vector<8x128xf32>,
    %c0_i32_9 = arith.constant 0 : i32
    %17 = arith.cmpi eq, %arg1, %c0_i32_9 : i32
    %18 = arith.extui %17 : i1 to i32
    %c0_i32_10 = arith.constant 0 : i32
    %19 = arith.cmpi ne, %18, %c0_i32_10 : i32
    scf.if %19 {
      %c0_11 = arith.constant 0 : index
      %c0_12 = arith.constant 0 : index
      %20 = vector.load %arg5[%c0_11, %c0_12] : memref<8x128xf32, #tpu.memory_space<vmem>>, vector<8x128xf32>
      %c0_13 = arith.constant 0 : index
      %c0_14 = arith.constant 0 : index
      %21 = vector.load %arg4[%c0_13, %c0_14] : memref<8x128xf32, #tpu.memory_space<vmem>>, vector<8x128xf32>
      tpu.vector_store %arg4[%c0_13, %c0_14], %20 {strides = array<i32>} : memref<8x128xf32, #tpu.memory_space<vmem>>, vector<8x128xf32>,
    } else {
    }
    return
  }
  func.func @transform_0(%arg0: i32, %arg1: i32) -> (i32, i32) {
    %c1_i32 = arith.constant 1 : i32
    %0 = arith.muli %arg0, %c1_i32 : i32
    %1 = arith.addi %0, %arg1 : i32
    %c0_i32 = arith.constant 0 : i32
    %2 = arith.minsi %1, %c0_i32 : i32
    %c0_i32_0 = arith.constant 0 : i32
    %c0_i32_1 = arith.constant 0 : i32
    return %2, %c0_i32_0 : i32, i32
  }
  func.func @transform_1(%arg0: i32, %arg1: i32) -> (i32, i32) {
    %c1_i32 = arith.constant 1 : i32
    %0 = arith.muli %arg0, %c1_i32 : i32
    %1 = arith.addi %0, %arg1 : i32
    %c0_i32 = arith.constant 0 : i32
    %2 = arith.minsi %1, %c0_i32 : i32
    %c0_i32_0 = arith.constant 0 : i32
    %c0_i32_1 = arith.constant 0 : i32
    return %2, %c0_i32_0 : i32, i32
  }
  func.func @transform_2(%arg0: i32, %arg1: i32) -> (i32, i32) {
    %c0_i32 = arith.constant 0 : i32
    %c0_i32_0 = arith.constant 0 : i32
    return %arg0, %c0_i32 : i32, i32
  }
}

</mosaic_0001>

<llo_original>
// kernel: tpu_custom_call.1
$region0: #{tpu_custom_call.1}
  #allocation0 [shape = 'u32[]', space=smem, size = 0x4, offset = 0x4, fixed_abs, tag = 'smem constant byte address 0x4 - core index']
  #allocation1 [shape = 'u32[144,128]{1,0:T(1,128)}', space=vmem, size = 0x12000, scoped, tag = 'internal scratch']
  #allocation2 [shape = 'f32[8,128]{1,0:T(8,128)}', space=vmem, size = 0x1000, scoped, tag = 'scratch operand']
  %s0 = inlined_call_operand.hbm [shape: f32[16,128], index: 0, kind: input, shape index: {}]
  %s1 = inlined_call_operand.hbm [shape: f32[16,128], index: 1, kind: input, shape index: {}]
  %s2 = inlined_call_operand.hbm [shape: f32[8,128], index: 2, kind: output, shape index: {}]
  %s3 = sld [smem:[#allocation0]]
  $region34: #{tpu_custom_call.1} parent=0
    _
  %s5 = ssub.s32 1, %s3
  %s6 = scalar_select 0, %s5, %s3
  $region1: #{tpu_custom_call.1} parent=0
    #allocation3 [shape = 'u8[8192]{0}', space=vmem, size = 0x2000, scoped, tag = 'input window, operand 0, single buffered']
    #allocation4 [shape = 's32[1]{0}', space=sflag, size = 0x4, scoped, tag = 'scoped memory for tpu_custom_call.1']
    #allocation5 [shape = 's32[1]{0}', space=sflag, size = 0x4, scoped, tag = 'scoped memory for tpu_custom_call.1']
    #allocation6 [shape = 'u8[8192]{0}', space=vmem, size = 0x2000, scoped, tag = 'input window, operand 1, single buffered']
    #allocation7 [shape = 's32[1]{0}', space=sflag, size = 0x4, scoped, tag = 'scoped memory for tpu_custom_call.1']
    #allocation8 [shape = 'u8[4096]{0}', space=vmem, size = 0x1000, scoped, tag = 'output window, operand 0, single buffered']
    %7 = vsyncpa [#allocation4], 0
    %8 = vsyncpa [#allocation7], 0
    %9 = vsyncpa [#allocation5], 0
    // Predicated region
    $region2: #{tpu_custom_call.1} parent=1 // pred_check
      _
    $region3: #{tpu_custom_call.1} parent=1 // pred_check_branch
      %11 = sbr.rel (0) target = $region5
    $region4: #{tpu_custom_call.1} parent=1 // pred_region
      %s12 = sadd.s32 0, 0
      %p13 = scmp.lt.s32.totalorder %s12, 0
      %s14 = scalar_select %p13, %s12, 0
      %s15 = smul.u32 2, %s14
      %s17 = ssub.s32 256, 256
      %18 = vsyncadd [#allocation4], %s17
      %s19 = smul.addr %s15, 128
      %s20 = scalar_lea.hbm %s0, %s19
      %s21 = sshll.u32 [#allocation3], 4
      %s22 = int_to_ptr.vmem [resolvable:$true] %s21
      %27 = dma.hbm_to_vmem [thread:$0]  %s20, 256, %s22, [#allocation4], 128, 128, 8
    $region5: #{tpu_custom_call.1} parent=1 // pred_fallthru
      _
    // Predicated region
    $region6: #{tpu_custom_call.1} parent=1 // pred_check
      _
    $region7: #{tpu_custom_call.1} parent=1 // pred_check_branch
      %29 = sbr.rel (0) target = $region9
    $region8: #{tpu_custom_call.1} parent=1 // pred_region
      %s30 = sadd.s32 0, 0
      %p31 = scmp.lt.s32.totalorder %s30, 0
      %s32 = scalar_select %p31, %s30, 0
      %s33 = smul.u32 2, %s32
      %s35 = ssub.s32 256, 256
      %36 = vsyncadd [#allocation7], %s35
      %s37 = smul.addr %s33, 128
      %s38 = scalar_lea.hbm %s1, %s37
      %s39 = sshll.u32 [#allocation6], 4
      %s40 = int_to_ptr.vmem [resolvable:$true] %s39
      %45 = dma.hbm_to_vmem [thread:$0]  %s38, 256, %s40, [#allocation7], 128, 128, 8
    $region9: #{tpu_custom_call.1} parent=1 // pred_fallthru
      _
    // Predicated region
    $region10: #{tpu_custom_call.1} parent=1 // pred_check
      _
    $region11: #{tpu_custom_call.1} parent=1 // pred_check_branch
      %47 = sbr.rel (0) target = $region13
    $region12: #{tpu_custom_call.1} parent=1 // pred_region
      %48 = dma.done [#allocation4], 256
    $region13: #{tpu_custom_call.1} parent=1 // pred_fallthru
      _
    // Predicated region
    $region14: #{tpu_custom_call.1} parent=1 // pred_check
      _
    $region15: #{tpu_custom_call.1} parent=1 // pred_check_branch
      %50 = sbr.rel (0) target = $region17
    $region16: #{tpu_custom_call.1} parent=1 // pred_region
      %51 = dma.done [#allocation7], 256
    $region17: #{tpu_custom_call.1} parent=1 // pred_fallthru
      _
    %s52 = sadd.s32 0, 0
    %p53 = scmp.lt.s32.totalorder %s52, 0
    %s54 = scalar_select %p53, %s52, 0
    %s55 = smul.u32 2, %s54
    %s56 = sadd.s32 0, 0
    %p57 = scmp.lt.s32.totalorder %s56, 0
    %s58 = scalar_select %p57, %s56, 0
    %s59 = smul.u32 2, %s58
    %p60 = scmp.eq.s32.totalorder 0, 0
    // Predicated region
    $region18: #{tpu_custom_call.1} parent=1 // pred_check
      %p61 = pneg %p60
    $region19: #{tpu_custom_call.1} parent=1 // pred_check_branch
      %63 = sbr.rel (%p61) target = $region21
    $region20: #{tpu_custom_call.1} parent=1 // pred_region
      %64 = vst [vmem:[#allocation2] sm:$0xff] 0.0
    $region21: #{tpu_custom_call.1} parent=1 // pred_fallthru
      _
    %v65 = vld [vmem:[#allocation3] sm:$0xff]
    %v66 = vld [vmem:[#allocation3 + $0x8] sm:$0xff]
    %v67 = vld [vmem:[#allocation6] sm:$0xff]
    %v68 = vld [vmem:[#allocation6 + $0x8] sm:$0xff]
    %v69 = vsub.f32 %v65, %v67
    %v70 = vsub.f32 %v66, %v68
    %v71 = vand.u32 2147483647, %v69
    %v72 = vand.u32 2147483647, %v70
    %v73 = vmul.f32 %v71, -2.0
    %v74 = vmul.f32 %v72, -2.0
    %v75 = vmul.f32 %v73, 1.442695
    %v76 = vpow.pop %v75
    %v77 = vmul.f32 %v74, 1.442695
    %v78 = vpow.pop %v77
    %v79 = vadd.f32 %v76, 1.0
    %v80 = vlog2.pop %v79
    %v81 = vmul.f32 %v80, 0.6931472
    %v82 = vmul.f32 -0.5, %v76
    %v83 = vadd.f32 %v82, 1.0
    %v84 = vmul.f32 %v83, %v76
    %v85 = vand.u32 2147483647, %v76
    %vm86 = vcmp.lt.f32.partialorder %v85, 0.0004427343
    %v87 = vsel %vm86, %v84, %v81
    %v88 = vadd.f32 %v78, 1.0
    %v89 = vlog2.pop %v88
    %v90 = vmul.f32 %v89, 0.6931472
    %v91 = vmul.f32 -0.5, %v78
    %v92 = vadd.f32 %v91, 1.0
    %v93 = vmul.f32 %v92, %v78
    %v94 = vand.u32 2147483647, %v78
    %vm95 = vcmp.lt.f32.partialorder %v94, 0.0004427343
    %v96 = vsel %vm95, %v93, %v90
    %v97 = vadd.f32 %v71, %v87
    %v98 = vadd.f32 %v72, %v96
    %v99 = vld [vmem:[#allocation2] sm:$0xff]
    %v100 = vadd.f32 %v97, %v98
    %v101 = vadd.f32 %v99, %v100
    %102 = vst [vmem:[#allocation2] sm:$0xff] %v101
    // Predicated region
    $region22: #{tpu_custom_call.1} parent=1 // pred_check
      %p103 = pneg %p60
    $region23: #{tpu_custom_call.1} parent=1 // pred_check_branch
      %105 = sbr.rel (%p103) target = $region25
    $region24: #{tpu_custom_call.1} parent=1 // pred_region
      %v106 = vld [vmem:[#allocation2] sm:$0xff]
      %107 = vst [vmem:[#allocation8] sm:$0xff] %v106
    $region25: #{tpu_custom_call.1} parent=1 // pred_fallthru
      _
    // Predicated region
    $region26: #{tpu_custom_call.1} parent=1 // pred_check
      _
    $region27: #{tpu_custom_call.1} parent=1 // pred_check_branch
      %109 = sbr.rel (0) target = $region29
    $region28: #{tpu_custom_call.1} parent=1 // pred_region
      %s111 = ssub.s32 128, 128
      %112 = vsyncadd [#allocation5], %s111
      %s114 = sshll.u32 [#allocation8], 4
      %s115 = int_to_ptr.vmem [resolvable:$true] %s114
      %117 = dma.vmem_to_hbm [thread:$0]  %s115, 128, %s2, [#allocation5]
    $region29: #{tpu_custom_call.1} parent=1 // pred_fallthru
      _
    // Predicated region
    $region30: #{tpu_custom_call.1} parent=1 // pred_check
      _
    $region31: #{tpu_custom_call.1} parent=1 // pred_check_branch
      %119 = sbr.rel (0) target = $region33
    $region32: #{tpu_custom_call.1} parent=1 // pred_region
      %120 = dma.done [#allocation5], 128
    $region33: #{tpu_custom_call.1} parent=1 // pred_fallthru
      _
    %121 = vsyncpa [#allocation4], 1
    %122 = vsyncpa [#allocation7], 1
    %123 = vsyncpa [#allocation5], 1

</llo_original>
